<compile_context>
chip_gen: v6e
topology: v6e:2x2x1
jax: 0.10.0
libtpu: 0.0.40
codegen_flags: <defaults>
</compile_context>

<pallas_src>
import functools

import jax
import jax.numpy as jnp
from jax.experimental import pallas as pl
from jax.experimental.pallas import tpu as pltpu


_LANES = 128  # lane-padded width of the packed per-batch result


def _grad_loss_kernel(pred_ref, targ_ref, mask_ref, out_ref, *, scales):
    """One batch image per grid step.

    For each scale s (step = 2**s) this computes, on the full-resolution tile,
      num_s = sum |d[r, c+step] - d[r, c]| * m[r, c+step] * m[r, c]
            + sum |d[r+step, c] - d[r, c]| * m[r+step, c] * m[r, c]
      den_s = sum m[r, c]
    restricted to decimated-grid points (r % step == 0 and c % step == 0), which is
    exactly gradient_loss(prediction[:, ::step, ::step], ...) of the torch reference.

    Results are packed into out_ref (2, 128): [0, s] -> num_s, [1, s] -> den_s.
    """
    pred = pred_ref[...].astype(jnp.float32)
    targ = targ_ref[...].astype(jnp.float32)
    mask = mask_ref[...].astype(jnp.float32)
    h, w = pred.shape

    diff = mask * (pred - targ)

    row = jax.lax.broadcasted_iota(jnp.int32, (h, w), 0)
    col = jax.lax.broadcasted_iota(jnp.int32, (h, w), 1)

    sub_o = jax.lax.broadcasted_iota(jnp.int32, (2, _LANES), 0)
    lane_o = jax.lax.broadcasted_iota(jnp.int32, (2, _LANES), 1)

    packed = jnp.zeros((2, _LANES), jnp.float32)

    for s in range(scales):
        step = 2 ** s
        # Points belonging to the decimated (::step, ::step) grid.
        on_grid = jnp.logical_and(row % step == 0, col % step == 0)

        num_val = jnp.float32(0.0)

        if step < w:
            # Neighbour one decimated column to the right, full-shape via XLU roll.
            # Wrapped lanes are discarded by valid_x.
            diff_x = pltpu.roll(diff, w - step, axis=1)
            mask_x = pltpu.roll(mask, w - step, axis=1)
            valid_x = jnp.logical_and(on_grid, col + step < w)
            gx = jnp.where(valid_x, jnp.abs(diff_x - diff) * (mask_x * mask), 0.0)
            num_val = num_val + jnp.sum(gx)

        if step < h:
            diff_y = pltpu.roll(diff, h - step, axis=0)
            mask_y = pltpu.roll(mask, h - step, axis=0)
            valid_y = jnp.logical_and(on_grid, row + step < h)
            gy = jnp.where(valid_y, jnp.abs(diff_y - diff) * (mask_y * mask), 0.0)
            num_val = num_val + jnp.sum(gy)

        den_val = jnp.sum(jnp.where(on_grid, mask, 0.0))

        packed = packed + jnp.where(
            jnp.logical_and(sub_o == 0, lane_o == s), num_val, 0.0)
        packed = packed + jnp.where(
            jnp.logical_and(sub_o == 1, lane_o == s), den_val, 0.0)

    out_ref[...] = packed


def gradient_loss_forward(prediction, target, mask, scales=4):
    """Matches GradientLoss(scales, reduction='batch-based').forward."""
    b, h, w = prediction.shape
    kernel = functools.partial(_grad_loss_kernel, scales=scales)

    packed = pl.pallas_call(
        kernel,
        out_shape=jax.ShapeDtypeStruct((b, 2, _LANES), jnp.float32),
        grid=(b,),
        in_specs=[
            pl.BlockSpec((None, h, w), lambda i: (i, 0, 0)),
            pl.BlockSpec((None, h, w), lambda i: (i, 0, 0)),
            pl.BlockSpec((None, h, w), lambda i: (i, 0, 0)),
        ],
        out_specs=pl.BlockSpec((None, 2, _LANES), lambda i: (i, 0, 0)),
        compiler_params=pltpu.CompilerParams(
            dimension_semantics=("parallel",),
        ),
    )(prediction, target, mask)

    # reduction_batch_based per scale: sum_b(image_loss) / sum(mask), or 0 if empty.
    num_s = jnp.sum(packed[:, 0, :scales], axis=0)  # (scales,)
    den_s = jnp.sum(packed[:, 1, :scales], axis=0)  # (scales,)
    safe_den = jnp.where(den_s == 0, jnp.float32(1.0), den_s)
    per_scale = jnp.where(den_s == 0, jnp.float32(0.0), num_s / safe_den)
    return jnp.sum(per_scale)


def _gradient_loss_ref(prediction, target, mask, scales=4):
    """Pure-JAX reference mirroring the torch module (for validation)."""
    p32 = prediction.astype(jnp.float32)
    t32 = target.astype(jnp.float32)
    m32 = mask.astype(jnp.float32)
    total = jnp.float32(0.0)
    for scale in range(scales):
        step = 2 ** scale
        p = p32[:, ::step, ::step]
        t = t32[:, ::step, ::step]
        m = m32[:, ::step, ::step]
        diff = m * (p - t)
        gx = jnp.abs(diff[:, :, 1:] - diff[:, :, :-1]) * (m[:, :, 1:] * m[:, :, :-1])
        gy = jnp.abs(diff[:, 1:, :] - diff[:, :-1, :]) * (m[:, 1:, :] * m[:, :-1, :])
        num = jnp.sum(gx) + jnp.sum(gy)
        den = jnp.sum(m)
        total = total + jnp.where(den == 0, 0.0, num / jnp.where(den == 0, 1.0, den))
    return total


if __name__ == "__main__":
    key = jax.random.PRNGKey(0)
    kp, kt, km = jax.random.split(key, 3)

    B, H, W = 2, 16, 128  # W lane-aligned; small but representative
    prediction = jax.random.normal(kp, (B, H, W), dtype=jnp.float32)
    target = jax.random.normal(kt, (B, H, W), dtype=jnp.float32)
    mask = (jax.random.uniform(km, (B, H, W)) > 0.3).astype(jnp.float32)

    out = gradient_loss_forward(prediction, target, mask, scales=4)
    out = jax.block_until_ready(out)

    ref = _gradient_loss_ref(prediction, target, mask, scales=4)
    assert jnp.allclose(out, ref, rtol=1e-4, atol=1e-4), (out, ref)

    print("KERNEL_OK")
</pallas_src>

<mosaic_0001>
module attributes {stable_mosaic.version = 11 : i64} {
  func.func @_grad_loss_kernel(%arg0: i32, %arg1: memref<1x16x128xf32, #tpu.memory_space<vmem>>, %arg2: memref<1x16x128xf32, #tpu.memory_space<vmem>>, %arg3: memref<1x16x128xf32, #tpu.memory_space<vmem>>, %arg4: memref<1x2x128xf32, #tpu.memory_space<vmem>>) attributes {dimension_semantics = [#tpu.dimension_semantics<parallel>], iteration_bounds = array<i64: 2>, scalar_prefetch = 0 : i64, scratch_operands = 0 : i64, tpu.core_type = #tpu.core_type<tc>, window_params = [{transform_indices = @transform_0, window_bounds = array<i64: 1, 16, 128>}, {transform_indices = @transform_1, window_bounds = array<i64: 1, 16, 128>}, {transform_indices = @transform_2, window_bounds = array<i64: 1, 16, 128>}, {transform_indices = @transform_3, window_bounds = array<i64: 1, 2, 128>}]} {
    %c0 = arith.constant 0 : index
    %c0_0 = arith.constant 0 : index
    %c0_1 = arith.constant 0 : index
    %0 = vector.load %arg1[%c0, %c0_0, %c0_1] : memref<1x16x128xf32, #tpu.memory_space<vmem>>, vector<1x16x128xf32>
    %1 = vector.shape_cast %0 : vector<1x16x128xf32> to vector<16x128xf32>
    %c0_2 = arith.constant 0 : index
    %c0_3 = arith.constant 0 : index
    %c0_4 = arith.constant 0 : index
    %2 = vector.load %arg2[%c0_2, %c0_3, %c0_4] : memref<1x16x128xf32, #tpu.memory_space<vmem>>, vector<1x16x128xf32>
    %3 = vector.shape_cast %2 : vector<1x16x128xf32> to vector<16x128xf32>
    %c0_5 = arith.constant 0 : index
    %c0_6 = arith.constant 0 : index
    %c0_7 = arith.constant 0 : index
    %4 = vector.load %arg3[%c0_5, %c0_6, %c0_7] : memref<1x16x128xf32, #tpu.memory_space<vmem>>, vector<1x16x128xf32>
    %5 = vector.shape_cast %4 : vector<1x16x128xf32> to vector<16x128xf32>
    %6 = arith.subf %1, %3 : vector<16x128xf32>
    %7 = arith.mulf %5, %6 : vector<16x128xf32>
    %8 = tpu.iota {dimensions = array<i32: 0>} : vector<16x128xi32>
    %9 = tpu.iota {dimensions = array<i32: 1>} : vector<16x128xi32>
    %10 = tpu.iota {dimensions = array<i32: 0>} : vector<2x128xi32>
    %11 = tpu.iota {dimensions = array<i32: 1>} : vector<2x128xi32>
    %cst = arith.constant 0.000000e+00 : f32
    %12 = vector.broadcast %cst : f32 to vector<2x128xf32>
    %c1_i32 = arith.constant 1 : i32
    %c0_i32 = arith.constant 0 : i32
    %13 = arith.cmpi eq, %c1_i32, %c0_i32 : i32
    %c1_i32_8 = arith.constant 1 : i32
    %14 = arith.select %13, %c1_i32_8, %c1_i32 : i32
    %15 = vector.broadcast %14 : i32 to vector<16x128xi32>
    %16 = arith.remsi %8, %15 : vector<16x128xi32>
    %c0_i32_9 = arith.constant 0 : i32
    %17 = vector.broadcast %c0_i32_9 : i32 to vector<16x128xi32>
    %18 = arith.cmpi ne, %16, %17 : vector<16x128xi32>
    %c0_i32_10 = arith.constant 0 : i32
    %19 = vector.broadcast %c0_i32_10 : i32 to vector<16x128xi32>
    %20 = arith.cmpi slt, %16, %19 : vector<16x128xi32>
    %c0_i32_11 = arith.constant 0 : i32
    %21 = arith.cmpi slt, %14, %c0_i32_11 : i32
    %22 = vector.broadcast %21 : i1 to vector<16x128xi1>
    %23 = vector.broadcast %22 : vector<16x128xi1> to vector<16x128xi1>
    %24 = arith.xori %20, %23 : vector<16x128xi1>
    %25 = arith.andi %24, %18 : vector<16x128xi1>
    %26 = vector.broadcast %14 : i32 to vector<16x128xi32>
    %27 = arith.addi %16, %26 : vector<16x128xi32>
    %28 = arith.select %25, %27, %16 : vector<16x128xi1>, vector<16x128xi32>
    %c0_i32_12 = arith.constant 0 : i32
    %29 = vector.broadcast %c0_i32_12 : i32 to vector<16x128xi32>
    %30 = arith.cmpi eq, %28, %29 : vector<16x128xi32>
    %c1_i32_13 = arith.constant 1 : i32
    %c0_i32_14 = arith.constant 0 : i32
    %31 = arith.cmpi eq, %c1_i32_13, %c0_i32_14 : i32
    %c1_i32_15 = arith.constant 1 : i32
    %32 = arith.select %31, %c1_i32_15, %c1_i32_13 : i32
    %33 = vector.broadcast %32 : i32 to vector<16x128xi32>
    %34 = arith.remsi %9, %33 : vector<16x128xi32>
    %c0_i32_16 = arith.constant 0 : i32
    %35 = vector.broadcast %c0_i32_16 : i32 to vector<16x128xi32>
    %36 = arith.cmpi ne, %34, %35 : vector<16x128xi32>
    %c0_i32_17 = arith.constant 0 : i32
    %37 = vector.broadcast %c0_i32_17 : i32 to vector<16x128xi32>
    %38 = arith.cmpi slt, %34, %37 : vector<16x128xi32>
    %c0_i32_18 = arith.constant 0 : i32
    %39 = arith.cmpi slt, %32, %c0_i32_18 : i32
    %40 = vector.broadcast %39 : i1 to vector<16x128xi1>
    %41 = vector.broadcast %40 : vector<16x128xi1> to vector<16x128xi1>
    %42 = arith.xori %38, %41 : vector<16x128xi1>
    %43 = arith.andi %42, %36 : vector<16x128xi1>
    %44 = vector.broadcast %32 : i32 to vector<16x128xi32>
    %45 = arith.addi %34, %44 : vector<16x128xi32>
    %46 = arith.select %43, %45, %34 : vector<16x128xi1>, vector<16x128xi32>
    %c0_i32_19 = arith.constant 0 : i32
    %47 = vector.broadcast %c0_i32_19 : i32 to vector<16x128xi32>
    %48 = arith.cmpi eq, %46, %47 : vector<16x128xi32>
    %49 = arith.andi %30, %48 : vector<16x128xi1>
    %c127_i32 = arith.constant 127 : i32
    %50 = tpu.dynamic_rotate %7 by %c127_i32 dim 1 : vector<16x128xf32>, i32 -> vector<16x128xf32>
    %c127_i32_20 = arith.constant 127 : i32
    %51 = tpu.dynamic_rotate %5 by %c127_i32_20 dim 1 : vector<16x128xf32>, i32 -> vector<16x128xf32>
    %c1_i32_21 = arith.constant 1 : i32
    %52 = vector.broadcast %c1_i32_21 : i32 to vector<16x128xi32>
    %53 = arith.addi %9, %52 : vector<16x128xi32>
    %c128_i32 = arith.constant 128 : i32
    %54 = vector.broadcast %c128_i32 : i32 to vector<16x128xi32>
    %55 = arith.cmpi slt, %53, %54 : vector<16x128xi32>
    %56 = arith.andi %49, %55 : vector<16x128xi1>
    %57 = arith.subf %50, %7 : vector<16x128xf32>
    %58 = math.absf %57 : vector<16x128xf32>
    %59 = arith.mulf %51, %5 : vector<16x128xf32>
    %60 = arith.mulf %58, %59 : vector<16x128xf32>
    %cst_22 = arith.constant 0.000000e+00 : f32
    %61 = vector.broadcast %cst_22 : f32 to vector<16x128xf32>
    %62 = arith.select %56, %60, %61 : vector<16x128xi1>, vector<16x128xf32>
    %63 = vector.shape_cast %62 : vector<16x128xf32> to vector<1x16x128xf32>
    %cst_23 = arith.constant dense<0.000000e+00> : vector<1xf32>
    %64 = vector.multi_reduction <add>, %63, %cst_23 [1, 2] : vector<1x16x128xf32> to vector<1xf32>
    %65 = vector.shape_cast %64 : vector<1xf32> to vector<1x1x1xf32>
    %66 = vector.extract %65[0, 0, 0] : f32 from vector<1x1x1xf32>
    %cst_24 = arith.constant 0.000000e+00 : f32
    %67 = arith.addf %cst_24, %66 : f32
    %c15_i32 = arith.constant 15 : i32
    %68 = tpu.dynamic_rotate %7 by %c15_i32 dim 0 : vector<16x128xf32>, i32 -> vector<16x128xf32>
    %c15_i32_25 = arith.constant 15 : i32
    %69 = tpu.dynamic_rotate %5 by %c15_i32_25 dim 0 : vector<16x128xf32>, i32 -> vector<16x128xf32>
    %c1_i32_26 = arith.constant 1 : i32
    %70 = vector.broadcast %c1_i32_26 : i32 to vector<16x128xi32>
    %71 = arith.addi %8, %70 : vector<16x128xi32>
    %c16_i32 = arith.constant 16 : i32
    %72 = vector.broadcast %c16_i32 : i32 to vector<16x128xi32>
    %73 = arith.cmpi slt, %71, %72 : vector<16x128xi32>
    %74 = arith.andi %49, %73 : vector<16x128xi1>
    %75 = arith.subf %68, %7 : vector<16x128xf32>
    %76 = math.absf %75 : vector<16x128xf32>
    %77 = arith.mulf %69, %5 : vector<16x128xf32>
    %78 = arith.mulf %76, %77 : vector<16x128xf32>
    %cst_27 = arith.constant 0.000000e+00 : f32
    %79 = vector.broadcast %cst_27 : f32 to vector<16x128xf32>
    %80 = arith.select %74, %78, %79 : vector<16x128xi1>, vector<16x128xf32>
    %81 = vector.shape_cast %80 : vector<16x128xf32> to vector<1x16x128xf32>
    %cst_28 = arith.constant dense<0.000000e+00> : vector<1xf32>
    %82 = vector.multi_reduction <add>, %81, %cst_28 [1, 2] : vector<1x16x128xf32> to vector<1xf32>
    %83 = vector.shape_cast %82 : vector<1xf32> to vector<1x1x1xf32>
    %84 = vector.extract %83[0, 0, 0] : f32 from vector<1x1x1xf32>
    %85 = arith.addf %67, %84 : f32
    %cst_29 = arith.constant 0.000000e+00 : f32
    %86 = vector.broadcast %cst_29 : f32 to vector<16x128xf32>
    %87 = arith.select %49, %5, %86 : vector<16x128xi1>, vector<16x128xf32>
    %88 = vector.shape_cast %87 : vector<16x128xf32> to vector<1x16x128xf32>
    %cst_30 = arith.constant dense<0.000000e+00> : vector<1xf32>
    %89 = vector.multi_reduction <add>, %88, %cst_30 [1, 2] : vector<1x16x128xf32> to vector<1xf32>
    %90 = vector.shape_cast %89 : vector<1xf32> to vector<1x1x1xf32>
    %91 = vector.extract %90[0, 0, 0] : f32 from vector<1x1x1xf32>
    %c0_i32_31 = arith.constant 0 : i32
    %92 = vector.broadcast %c0_i32_31 : i32 to vector<2x128xi32>
    %93 = arith.cmpi eq, %10, %92 : vector<2x128xi32>
    %c0_i32_32 = arith.constant 0 : i32
    %94 = vector.broadcast %c0_i32_32 : i32 to vector<2x128xi32>
    %95 = arith.cmpi eq, %11, %94 : vector<2x128xi32>
    %96 = arith.andi %93, %95 : vector<2x128xi1>
    %cst_33 = arith.constant 0.000000e+00 : f32
    %97 = vector.broadcast %85 : f32 to vector<2x128xf32>
    %98 = vector.broadcast %cst_33 : f32 to vector<2x128xf32>
    %99 = arith.select %96, %97, %98 : vector<2x128xi1>, vector<2x128xf32>
    %100 = arith.addf %12, %99 : vector<2x128xf32>
    %c1_i32_34 = arith.constant 1 : i32
    %101 = vector.broadcast %c1_i32_34 : i32 to vector<2x128xi32>
    %102 = arith.cmpi eq, %10, %101 : vector<2x128xi32>
    %c0_i32_35 = arith.constant 0 : i32
    %103 = vector.broadcast %c0_i32_35 : i32 to vector<2x128xi32>
    %104 = arith.cmpi eq, %11, %103 : vector<2x128xi32>
    %105 = arith.andi %102, %104 : vector<2x128xi1>
    %cst_36 = arith.constant 0.000000e+00 : f32
    %106 = vector.broadcast %91 : f32 to vector<2x128xf32>
    %107 = vector.broadcast %cst_36 : f32 to vector<2x128xf32>
    %108 = arith.select %105, %106, %107 : vector<2x128xi1>, vector<2x128xf32>
    %109 = arith.addf %100, %108 : vector<2x128xf32>
    %c2_i32 = arith.constant 2 : i32
    %c0_i32_37 = arith.constant 0 : i32
    %110 = arith.cmpi eq, %c2_i32, %c0_i32_37 : i32
    %c1_i32_38 = arith.constant 1 : i32
    %111 = arith.select %110, %c1_i32_38, %c2_i32 : i32
    %112 = vector.broadcast %111 : i32 to vector<16x128xi32>
    %113 = arith.remsi %8, %112 : vector<16x128xi32>
    %c0_i32_39 = arith.constant 0 : i32
    %114 = vector.broadcast %c0_i32_39 : i32 to vector<16x128xi32>
    %115 = arith.cmpi ne, %113, %114 : vector<16x128xi32>
    %c0_i32_40 = arith.constant 0 : i32
    %116 = vector.broadcast %c0_i32_40 : i32 to vector<16x128xi32>
    %117 = arith.cmpi slt, %113, %116 : vector<16x128xi32>
    %c0_i32_41 = arith.constant 0 : i32
    %118 = arith.cmpi slt, %111, %c0_i32_41 : i32
    %119 = vector.broadcast %118 : i1 to vector<16x128xi1>
    %120 = vector.broadcast %119 : vector<16x128xi1> to vector<16x128xi1>
    %121 = arith.xori %117, %120 : vector<16x128xi1>
    %122 = arith.andi %121, %115 : vector<16x128xi1>
    %123 = vector.broadcast %111 : i32 to vector<16x128xi32>
    %124 = arith.addi %113, %123 : vector<16x128xi32>
    %125 = arith.select %122, %124, %113 : vector<16x128xi1>, vector<16x128xi32>
    %c0_i32_42 = arith.constant 0 : i32
    %126 = vector.broadcast %c0_i32_42 : i32 to vector<16x128xi32>
    %127 = arith.cmpi eq, %125, %126 : vector<16x128xi32>
    %c2_i32_43 = arith.constant 2 : i32
    %c0_i32_44 = arith.constant 0 : i32
    %128 = arith.cmpi eq, %c2_i32_43, %c0_i32_44 : i32
    %c1_i32_45 = arith.constant 1 : i32
    %129 = arith.select %128, %c1_i32_45, %c2_i32_43 : i32
    %130 = vector.broadcast %129 : i32 to vector<16x128xi32>
    %131 = arith.remsi %9, %130 : vector<16x128xi32>
    %c0_i32_46 = arith.constant 0 : i32
    %132 = vector.broadcast %c0_i32_46 : i32 to vector<16x128xi32>
    %133 = arith.cmpi ne, %131, %132 : vector<16x128xi32>
    %c0_i32_47 = arith.constant 0 : i32
    %134 = vector.broadcast %c0_i32_47 : i32 to vector<16x128xi32>
    %135 = arith.cmpi slt, %131, %134 : vector<16x128xi32>
    %c0_i32_48 = arith.constant 0 : i32
    %136 = arith.cmpi slt, %129, %c0_i32_48 : i32
    %137 = vector.broadcast %136 : i1 to vector<16x128xi1>
    %138 = vector.broadcast %137 : vector<16x128xi1> to vector<16x128xi1>
    %139 = arith.xori %135, %138 : vector<16x128xi1>
    %140 = arith.andi %139, %133 : vector<16x128xi1>
    %141 = vector.broadcast %129 : i32 to vector<16x128xi32>
    %142 = arith.addi %131, %141 : vector<16x128xi32>
    %143 = arith.select %140, %142, %131 : vector<16x128xi1>, vector<16x128xi32>
    %c0_i32_49 = arith.constant 0 : i32
    %144 = vector.broadcast %c0_i32_49 : i32 to vector<16x128xi32>
    %145 = arith.cmpi eq, %143, %144 : vector<16x128xi32>
    %146 = arith.andi %127, %145 : vector<16x128xi1>
    %c126_i32 = arith.constant 126 : i32
    %147 = tpu.dynamic_rotate %7 by %c126_i32 dim 1 : vector<16x128xf32>, i32 -> vector<16x128xf32>
    %c126_i32_50 = arith.constant 126 : i32
    %148 = tpu.dynamic_rotate %5 by %c126_i32_50 dim 1 : vector<16x128xf32>, i32 -> vector<16x128xf32>
    %c2_i32_51 = arith.constant 2 : i32
    %149 = vector.broadcast %c2_i32_51 : i32 to vector<16x128xi32>
    %150 = arith.addi %9, %149 : vector<16x128xi32>
    %c128_i32_52 = arith.constant 128 : i32
    %151 = vector.broadcast %c128_i32_52 : i32 to vector<16x128xi32>
    %152 = arith.cmpi slt, %150, %151 : vector<16x128xi32>
    %153 = arith.andi %146, %152 : vector<16x128xi1>
    %154 = arith.subf %147, %7 : vector<16x128xf32>
    %155 = math.absf %154 : vector<16x128xf32>
    %156 = arith.mulf %148, %5 : vector<16x128xf32>
    %157 = arith.mulf %155, %156 : vector<16x128xf32>
    %cst_53 = arith.constant 0.000000e+00 : f32
    %158 = vector.broadcast %cst_53 : f32 to vector<16x128xf32>
    %159 = arith.select %153, %157, %158 : vector<16x128xi1>, vector<16x128xf32>
    %160 = vector.shape_cast %159 : vector<16x128xf32> to vector<1x16x128xf32>
    %cst_54 = arith.constant dense<0.000000e+00> : vector<1xf32>
    %161 = vector.multi_reduction <add>, %160, %cst_54 [1, 2] : vector<1x16x128xf32> to vector<1xf32>
    %162 = vector.shape_cast %161 : vector<1xf32> to vector<1x1x1xf32>
    %163 = vector.extract %162[0, 0, 0] : f32 from vector<1x1x1xf32>
    %cst_55 = arith.constant 0.000000e+00 : f32
    %164 = arith.addf %cst_55, %163 : f32
    %c14_i32 = arith.constant 14 : i32
    %165 = tpu.dynamic_rotate %7 by %c14_i32 dim 0 : vector<16x128xf32>, i32 -> vector<16x128xf32>
    %c14_i32_56 = arith.constant 14 : i32
    %166 = tpu.dynamic_rotate %5 by %c14_i32_56 dim 0 : vector<16x128xf32>, i32 -> vector<16x128xf32>
    %c2_i32_57 = arith.constant 2 : i32
    %167 = vector.broadcast %c2_i32_57 : i32 to vector<16x128xi32>
    %168 = arith.addi %8, %167 : vector<16x128xi32>
    %c16_i32_58 = arith.constant 16 : i32
    %169 = vector.broadcast %c16_i32_58 : i32 to vector<16x128xi32>
    %170 = arith.cmpi slt, %168, %169 : vector<16x128xi32>
    %171 = arith.andi %146, %170 : vector<16x128xi1>
    %172 = arith.subf %165, %7 : vector<16x128xf32>
    %173 = math.absf %172 : vector<16x128xf32>
    %174 = arith.mulf %166, %5 : vector<16x128xf32>
    %175 = arith.mulf %173, %174 : vector<16x128xf32>
    %cst_59 = arith.constant 0.000000e+00 : f32
    %176 = vector.broadcast %cst_59 : f32 to vector<16x128xf32>
    %177 = arith.select %171, %175, %176 : vector<16x128xi1>, vector<16x128xf32>
    %178 = vector.shape_cast %177 : vector<16x128xf32> to vector<1x16x128xf32>
    %cst_60 = arith.constant dense<0.000000e+00> : vector<1xf32>
    %179 = vector.multi_reduction <add>, %178, %cst_60 [1, 2] : vector<1x16x128xf32> to vector<1xf32>
    %180 = vector.shape_cast %179 : vector<1xf32> to vector<1x1x1xf32>
    %181 = vector.extract %180[0, 0, 0] : f32 from vector<1x1x1xf32>
    %182 = arith.addf %164, %181 : f32
    %cst_61 = arith.constant 0.000000e+00 : f32
    %183 = vector.broadcast %cst_61 : f32 to vector<16x128xf32>
    %184 = arith.select %146, %5, %183 : vector<16x128xi1>, vector<16x128xf32>
    %185 = vector.shape_cast %184 : vector<16x128xf32> to vector<1x16x128xf32>
    %cst_62 = arith.constant dense<0.000000e+00> : vector<1xf32>
    %186 = vector.multi_reduction <add>, %185, %cst_62 [1, 2] : vector<1x16x128xf32> to vector<1xf32>
    %187 = vector.shape_cast %186 : vector<1xf32> to vector<1x1x1xf32>
    %188 = vector.extract %187[0, 0, 0] : f32 from vector<1x1x1xf32>
    %c0_i32_63 = arith.constant 0 : i32
    %189 = vector.broadcast %c0_i32_63 : i32 to vector<2x128xi32>
    %190 = arith.cmpi eq, %10, %189 : vector<2x128xi32>
    %c1_i32_64 = arith.constant 1 : i32
    %191 = vector.broadcast %c1_i32_64 : i32 to vector<2x128xi32>
    %192 = arith.cmpi eq, %11, %191 : vector<2x128xi32>
    %193 = arith.andi %190, %192 : vector<2x128xi1>
    %cst_65 = arith.constant 0.000000e+00 : f32
    %194 = vector.broadcast %182 : f32 to vector<2x128xf32>
    %195 = vector.broadcast %cst_65 : f32 to vector<2x128xf32>
    %196 = arith.select %193, %194, %195 : vector<2x128xi1>, vector<2x128xf32>
    %197 = arith.addf %109, %196 : vector<2x128xf32>
    %c1_i32_66 = arith.constant 1 : i32
    %198 = vector.broadcast %c1_i32_66 : i32 to vector<2x128xi32>
    %199 = arith.cmpi eq, %10, %198 : vector<2x128xi32>
    %c1_i32_67 = arith.constant 1 : i32
    %200 = vector.broadcast %c1_i32_67 : i32 to vector<2x128xi32>
    %201 = arith.cmpi eq, %11, %200 : vector<2x128xi32>
    %202 = arith.andi %199, %201 : vector<2x128xi1>
    %cst_68 = arith.constant 0.000000e+00 : f32
    %203 = vector.broadcast %188 : f32 to vector<2x128xf32>
    %204 = vector.broadcast %cst_68 : f32 to vector<2x128xf32>
    %205 = arith.select %202, %203, %204 : vector<2x128xi1>, vector<2x128xf32>
    %206 = arith.addf %197, %205 : vector<2x128xf32>
    %c4_i32 = arith.constant 4 : i32
    %c0_i32_69 = arith.constant 0 : i32
    %207 = arith.cmpi eq, %c4_i32, %c0_i32_69 : i32
    %c1_i32_70 = arith.constant 1 : i32
    %208 = arith.select %207, %c1_i32_70, %c4_i32 : i32
    %209 = vector.broadcast %208 : i32 to vector<16x128xi32>
    %210 = arith.remsi %8, %209 : vector<16x128xi32>
    %c0_i32_71 = arith.constant 0 : i32
    %211 = vector.broadcast %c0_i32_71 : i32 to vector<16x128xi32>
    %212 = arith.cmpi ne, %210, %211 : vector<16x128xi32>
    %c0_i32_72 = arith.constant 0 : i32
    %213 = vector.broadcast %c0_i32_72 : i32 to vector<16x128xi32>
    %214 = arith.cmpi slt, %210, %213 : vector<16x128xi32>
    %c0_i32_73 = arith.constant 0 : i32
    %215 = arith.cmpi slt, %208, %c0_i32_73 : i32
    %216 = vector.broadcast %215 : i1 to vector<16x128xi1>
    %217 = vector.broadcast %216 : vector<16x128xi1> to vector<16x128xi1>
    %218 = arith.xori %214, %217 : vector<16x128xi1>
    %219 = arith.andi %218, %212 : vector<16x128xi1>
    %220 = vector.broadcast %208 : i32 to vector<16x128xi32>
    %221 = arith.addi %210, %220 : vector<16x128xi32>
    %222 = arith.select %219, %221, %210 : vector<16x128xi1>, vector<16x128xi32>
    %c0_i32_74 = arith.constant 0 : i32
    %223 = vector.broadcast %c0_i32_74 : i32 to vector<16x128xi32>
    %224 = arith.cmpi eq, %222, %223 : vector<16x128xi32>
    %c4_i32_75 = arith.constant 4 : i32
    %c0_i32_76 = arith.constant 0 : i32
    %225 = arith.cmpi eq, %c4_i32_75, %c0_i32_76 : i32
    %c1_i32_77 = arith.constant 1 : i32
    %226 = arith.select %225, %c1_i32_77, %c4_i32_75 : i32
    %227 = vector.broadcast %226 : i32 to vector<16x128xi32>
    %228 = arith.remsi %9, %227 : vector<16x128xi32>
    %c0_i32_78 = arith.constant 0 : i32
    %229 = vector.broadcast %c0_i32_78 : i32 to vector<16x128xi32>
    %230 = arith.cmpi ne, %228, %229 : vector<16x128xi32>
    %c0_i32_79 = arith.constant 0 : i32
    %231 = vector.broadcast %c0_i32_79 : i32 to vector<16x128xi32>
    %232 = arith.cmpi slt, %228, %231 : vector<16x128xi32>
    %c0_i32_80 = arith.constant 0 : i32
    %233 = arith.cmpi slt, %226, %c0_i32_80 : i32
    %234 = vector.broadcast %233 : i1 to vector<16x128xi1>
    %235 = vector.broadcast %234 : vector<16x128xi1> to vector<16x128xi1>
    %236 = arith.xori %232, %235 : vector<16x128xi1>
    %237 = arith.andi %236, %230 : vector<16x128xi1>
    %238 = vector.broadcast %226 : i32 to vector<16x128xi32>
    %239 = arith.addi %228, %238 : vector<16x128xi32>
    %240 = arith.select %237, %239, %228 : vector<16x128xi1>, vector<16x128xi32>
    %c0_i32_81 = arith.constant 0 : i32
    %241 = vector.broadcast %c0_i32_81 : i32 to vector<16x128xi32>
    %242 = arith.cmpi eq, %240, %241 : vector<16x128xi32>
    %243 = arith.andi %224, %242 : vector<16x128xi1>
    %c124_i32 = arith.constant 124 : i32
    %244 = tpu.dynamic_rotate %7 by %c124_i32 dim 1 : vector<16x128xf32>, i32 -> vector<16x128xf32>
    %c124_i32_82 = arith.constant 124 : i32
    %245 = tpu.dynamic_rotate %5 by %c124_i32_82 dim 1 : vector<16x128xf32>, i32 -> vector<16x128xf32>
    %c4_i32_83 = arith.constant 4 : i32
    %246 = vector.broadcast %c4_i32_83 : i32 to vector<16x128xi32>
    %247 = arith.addi %9, %246 : vector<16x128xi32>
    %c128_i32_84 = arith.constant 128 : i32
    %248 = vector.broadcast %c128_i32_84 : i32 to vector<16x128xi32>
    %249 = arith.cmpi slt, %247, %248 : vector<16x128xi32>
    %250 = arith.andi %243, %249 : vector<16x128xi1>
    %251 = arith.subf %244, %7 : vector<16x128xf32>
    %252 = math.absf %251 : vector<16x128xf32>
    %253 = arith.mulf %245, %5 : vector<16x128xf32>
    %254 = arith.mulf %252, %253 : vector<16x128xf32>
    %cst_85 = arith.constant 0.000000e+00 : f32
    %255 = vector.broadcast %cst_85 : f32 to vector<16x128xf32>
    %256 = arith.select %250, %254, %255 : vector<16x128xi1>, vector<16x128xf32>
    %257 = vector.shape_cast %256 : vector<16x128xf32> to vector<1x16x128xf32>
    %cst_86 = arith.constant dense<0.000000e+00> : vector<1xf32>
    %258 = vector.multi_reduction <add>, %257, %cst_86 [1, 2] : vector<1x16x128xf32> to vector<1xf32>
    %259 = vector.shape_cast %258 : vector<1xf32> to vector<1x1x1xf32>
    %260 = vector.extract %259[0, 0, 0] : f32 from vector<1x1x1xf32>
    %cst_87 = arith.constant 0.000000e+00 : f32
    %261 = arith.addf %cst_87, %260 : f32
    %c12_i32 = arith.constant 12 : i32
    %262 = tpu.dynamic_rotate %7 by %c12_i32 dim 0 : vector<16x128xf32>, i32 -> vector<16x128xf32>
    %c12_i32_88 = arith.constant 12 : i32
    %263 = tpu.dynamic_rotate %5 by %c12_i32_88 dim 0 : vector<16x128xf32>, i32 -> vector<16x128xf32>
    %c4_i32_89 = arith.constant 4 : i32
    %264 = vector.broadcast %c4_i32_89 : i32 to vector<16x128xi32>
    %265 = arith.addi %8, %264 : vector<16x128xi32>
    %c16_i32_90 = arith.constant 16 : i32
    %266 = vector.broadcast %c16_i32_90 : i32 to vector<16x128xi32>
    %267 = arith.cmpi slt, %265, %266 : vector<16x128xi32>
    %268 = arith.andi %243, %267 : vector<16x128xi1>
    %269 = arith.subf %262, %7 : vector<16x128xf32>
    %270 = math.absf %269 : vector<16x128xf32>
    %271 = arith.mulf %263, %5 : vector<16x128xf32>
    %272 = arith.mulf %270, %271 : vector<16x128xf32>
    %cst_91 = arith.constant 0.000000e+00 : f32
    %273 = vector.broadcast %cst_91 : f32 to vector<16x128xf32>
    %274 = arith.select %268, %272, %273 : vector<16x128xi1>, vector<16x128xf32>
    %275 = vector.shape_cast %274 : vector<16x128xf32> to vector<1x16x128xf32>
    %cst_92 = arith.constant dense<0.000000e+00> : vector<1xf32>
    %276 = vector.multi_reduction <add>, %275, %cst_92 [1, 2] : vector<1x16x128xf32> to vector<1xf32>
    %277 = vector.shape_cast %276 : vector<1xf32> to vector<1x1x1xf32>
    %278 = vector.extract %277[0, 0, 0] : f32 from vector<1x1x1xf32>
    %279 = arith.addf %261, %278 : f32
    %cst_93 = arith.constant 0.000000e+00 : f32
    %280 = vector.broadcast %cst_93 : f32 to vector<16x128xf32>
    %281 = arith.select %243, %5, %280 : vector<16x128xi1>, vector<16x128xf32>
    %282 = vector.shape_cast %281 : vector<16x128xf32> to vector<1x16x128xf32>
    %cst_94 = arith.constant dense<0.000000e+00> : vector<1xf32>
    %283 = vector.multi_reduction <add>, %282, %cst_94 [1, 2] : vector<1x16x128xf32> to vector<1xf32>
    %284 = vector.shape_cast %283 : vector<1xf32> to vector<1x1x1xf32>
    %285 = vector.extract %284[0, 0, 0] : f32 from vector<1x1x1xf32>
    %c0_i32_95 = arith.constant 0 : i32
    %286 = vector.broadcast %c0_i32_95 : i32 to vector<2x128xi32>
    %287 = arith.cmpi eq, %10, %286 : vector<2x128xi32>
    %c2_i32_96 = arith.constant 2 : i32
    %288 = vector.broadcast %c2_i32_96 : i32 to vector<2x128xi32>
    %289 = arith.cmpi eq, %11, %288 : vector<2x128xi32>
    %290 = arith.andi %287, %289 : vector<2x128xi1>
    %cst_97 = arith.constant 0.000000e+00 : f32
    %291 = vector.broadcast %279 : f32 to vector<2x128xf32>
    %292 = vector.broadcast %cst_97 : f32 to vector<2x128xf32>
    %293 = arith.select %290, %291, %292 : vector<2x128xi1>, vector<2x128xf32>
    %294 = arith.addf %206, %293 : vector<2x128xf32>
    %c1_i32_98 = arith.constant 1 : i32
    %295 = vector.broadcast %c1_i32_98 : i32 to vector<2x128xi32>
    %296 = arith.cmpi eq, %10, %295 : vector<2x128xi32>
    %c2_i32_99 = arith.constant 2 : i32
    %297 = vector.broadcast %c2_i32_99 : i32 to vector<2x128xi32>
    %298 = arith.cmpi eq, %11, %297 : vector<2x128xi32>
    %299 = arith.andi %296, %298 : vector<2x128xi1>
    %cst_100 = arith.constant 0.000000e+00 : f32
    %300 = vector.broadcast %285 : f32 to vector<2x128xf32>
    %301 = vector.broadcast %cst_100 : f32 to vector<2x128xf32>
    %302 = arith.select %299, %300, %301 : vector<2x128xi1>, vector<2x128xf32>
    %303 = arith.addf %294, %302 : vector<2x128xf32>
    %c8_i32 = arith.constant 8 : i32
    %c0_i32_101 = arith.constant 0 : i32
    %304 = arith.cmpi eq, %c8_i32, %c0_i32_101 : i32
    %c1_i32_102 = arith.constant 1 : i32
    %305 = arith.select %304, %c1_i32_102, %c8_i32 : i32
    %306 = vector.broadcast %305 : i32 to vector<16x128xi32>
    %307 = arith.remsi %8, %306 : vector<16x128xi32>
    %c0_i32_103 = arith.constant 0 : i32
    %308 = vector.broadcast %c0_i32_103 : i32 to vector<16x128xi32>
    %309 = arith.cmpi ne, %307, %308 : vector<16x128xi32>
    %c0_i32_104 = arith.constant 0 : i32
    %310 = vector.broadcast %c0_i32_104 : i32 to vector<16x128xi32>
    %311 = arith.cmpi slt, %307, %310 : vector<16x128xi32>
    %c0_i32_105 = arith.constant 0 : i32
    %312 = arith.cmpi slt, %305, %c0_i32_105 : i32
    %313 = vector.broadcast %312 : i1 to vector<16x128xi1>
    %314 = vector.broadcast %313 : vector<16x128xi1> to vector<16x128xi1>
    %315 = arith.xori %311, %314 : vector<16x128xi1>
    %316 = arith.andi %315, %309 : vector<16x128xi1>
    %317 = vector.broadcast %305 : i32 to vector<16x128xi32>
    %318 = arith.addi %307, %317 : vector<16x128xi32>
    %319 = arith.select %316, %318, %307 : vector<16x128xi1>, vector<16x128xi32>
    %c0_i32_106 = arith.constant 0 : i32
    %320 = vector.broadcast %c0_i32_106 : i32 to vector<16x128xi32>
    %321 = arith.cmpi eq, %319, %320 : vector<16x128xi32>
    %c8_i32_107 = arith.constant 8 : i32
    %c0_i32_108 = arith.constant 0 : i32
    %322 = arith.cmpi eq, %c8_i32_107, %c0_i32_108 : i32
    %c1_i32_109 = arith.constant 1 : i32
    %323 = arith.select %322, %c1_i32_109, %c8_i32_107 : i32
    %324 = vector.broadcast %323 : i32 to vector<16x128xi32>
    %325 = arith.remsi %9, %324 : vector<16x128xi32>
    %c0_i32_110 = arith.constant 0 : i32
    %326 = vector.broadcast %c0_i32_110 : i32 to vector<16x128xi32>
    %327 = arith.cmpi ne, %325, %326 : vector<16x128xi32>
    %c0_i32_111 = arith.constant 0 : i32
    %328 = vector.broadcast %c0_i32_111 : i32 to vector<16x128xi32>
    %329 = arith.cmpi slt, %325, %328 : vector<16x128xi32>
    %c0_i32_112 = arith.constant 0 : i32
    %330 = arith.cmpi slt, %323, %c0_i32_112 : i32
    %331 = vector.broadcast %330 : i1 to vector<16x128xi1>
    %332 = vector.broadcast %331 : vector<16x128xi1> to vector<16x128xi1>
    %333 = arith.xori %329, %332 : vector<16x128xi1>
    %334 = arith.andi %333, %327 : vector<16x128xi1>
    %335 = vector.broadcast %323 : i32 to vector<16x128xi32>
    %336 = arith.addi %325, %335 : vector<16x128xi32>
    %337 = arith.select %334, %336, %325 : vector<16x128xi1>, vector<16x128xi32>
    %c0_i32_113 = arith.constant 0 : i32
    %338 = vector.broadcast %c0_i32_113 : i32 to vector<16x128xi32>
    %339 = arith.cmpi eq, %337, %338 : vector<16x128xi32>
    %340 = arith.andi %321, %339 : vector<16x128xi1>
    %c120_i32 = arith.constant 120 : i32
    %341 = tpu.dynamic_rotate %7 by %c120_i32 dim 1 : vector<16x128xf32>, i32 -> vector<16x128xf32>
    %c120_i32_114 = arith.constant 120 : i32
    %342 = tpu.dynamic_rotate %5 by %c120_i32_114 dim 1 : vector<16x128xf32>, i32 -> vector<16x128xf32>
    %c8_i32_115 = arith.constant 8 : i32
    %343 = vector.broadcast %c8_i32_115 : i32 to vector<16x128xi32>
    %344 = arith.addi %9, %343 : vector<16x128xi32>
    %c128_i32_116 = arith.constant 128 : i32
    %345 = vector.broadcast %c128_i32_116 : i32 to vector<16x128xi32>
    %346 = arith.cmpi slt, %344, %345 : vector<16x128xi32>
    %347 = arith.andi %340, %346 : vector<16x128xi1>
    %348 = arith.subf %341, %7 : vector<16x128xf32>
    %349 = math.absf %348 : vector<16x128xf32>
    %350 = arith.mulf %342, %5 : vector<16x128xf32>
    %351 = arith.mulf %349, %350 : vector<16x128xf32>
    %cst_117 = arith.constant 0.000000e+00 : f32
    %352 = vector.broadcast %cst_117 : f32 to vector<16x128xf32>
    %353 = arith.select %347, %351, %352 : vector<16x128xi1>, vector<16x128xf32>
    %354 = vector.shape_cast %353 : vector<16x128xf32> to vector<1x16x128xf32>
    %cst_118 = arith.constant dense<0.000000e+00> : vector<1xf32>
    %355 = vector.multi_reduction <add>, %354, %cst_118 [1, 2] : vector<1x16x128xf32> to vector<1xf32>
    %356 = vector.shape_cast %355 : vector<1xf32> to vector<1x1x1xf32>
    %357 = vector.extract %356[0, 0, 0] : f32 from vector<1x1x1xf32>
    %cst_119 = arith.constant 0.000000e+00 : f32
    %358 = arith.addf %cst_119, %357 : f32
    %c8_i32_120 = arith.constant 8 : i32
    %359 = tpu.dynamic_rotate %7 by %c8_i32_120 dim 0 : vector<16x128xf32>, i32 -> vector<16x128xf32>
    %c8_i32_121 = arith.constant 8 : i32
    %360 = tpu.dynamic_rotate %5 by %c8_i32_121 dim 0 : vector<16x128xf32>, i32 -> vector<16x128xf32>
    %c8_i32_122 = arith.constant 8 : i32
    %361 = vector.broadcast %c8_i32_122 : i32 to vector<16x128xi32>
    %362 = arith.addi %8, %361 : vector<16x128xi32>
    %c16_i32_123 = arith.constant 16 : i32
    %363 = vector.broadcast %c16_i32_123 : i32 to vector<16x128xi32>
    %364 = arith.cmpi slt, %362, %363 : vector<16x128xi32>
    %365 = arith.andi %340, %364 : vector<16x128xi1>
    %366 = arith.subf %359, %7 : vector<16x128xf32>
    %367 = math.absf %366 : vector<16x128xf32>
    %368 = arith.mulf %360, %5 : vector<16x128xf32>
    %369 = arith.mulf %367, %368 : vector<16x128xf32>
    %cst_124 = arith.constant 0.000000e+00 : f32
    %370 = vector.broadcast %cst_124 : f32 to vector<16x128xf32>
    %371 = arith.select %365, %369, %370 : vector<16x128xi1>, vector<16x128xf32>
    %372 = vector.shape_cast %371 : vector<16x128xf32> to vector<1x16x128xf32>
    %cst_125 = arith.constant dense<0.000000e+00> : vector<1xf32>
    %373 = vector.multi_reduction <add>, %372, %cst_125 [1, 2] : vector<1x16x128xf32> to vector<1xf32>
    %374 = vector.shape_cast %373 : vector<1xf32> to vector<1x1x1xf32>
    %375 = vector.extract %374[0, 0, 0] : f32 from vector<1x1x1xf32>
    %376 = arith.addf %358, %375 : f32
    %cst_126 = arith.constant 0.000000e+00 : f32
    %377 = vector.broadcast %cst_126 : f32 to vector<16x128xf32>
    %378 = arith.select %340, %5, %377 : vector<16x128xi1>, vector<16x128xf32>
    %379 = vector.shape_cast %378 : vector<16x128xf32> to vector<1x16x128xf32>
    %cst_127 = arith.constant dense<0.000000e+00> : vector<1xf32>
    %380 = vector.multi_reduction <add>, %379, %cst_127 [1, 2] : vector<1x16x128xf32> to vector<1xf32>
    %381 = vector.shape_cast %380 : vector<1xf32> to vector<1x1x1xf32>
    %382 = vector.extract %381[0, 0, 0] : f32 from vector<1x1x1xf32>
    %c0_i32_128 = arith.constant 0 : i32
    %383 = vector.broadcast %c0_i32_128 : i32 to vector<2x128xi32>
    %384 = arith.cmpi eq, %10, %383 : vector<2x128xi32>
    %c3_i32 = arith.constant 3 : i32
    %385 = vector.broadcast %c3_i32 : i32 to vector<2x128xi32>
    %386 = arith.cmpi eq, %11, %385 : vector<2x128xi32>
    %387 = arith.andi %384, %386 : vector<2x128xi1>
    %cst_129 = arith.constant 0.000000e+00 : f32
    %388 = vector.broadcast %376 : f32 to vector<2x128xf32>
    %389 = vector.broadcast %cst_129 : f32 to vector<2x128xf32>
    %390 = arith.select %387, %388, %389 : vector<2x128xi1>, vector<2x128xf32>
    %391 = arith.addf %303, %390 : vector<2x128xf32>
    %c1_i32_130 = arith.constant 1 : i32
    %392 = vector.broadcast %c1_i32_130 : i32 to vector<2x128xi32>
    %393 = arith.cmpi eq, %10, %392 : vector<2x128xi32>
    %c3_i32_131 = arith.constant 3 : i32
    %394 = vector.broadcast %c3_i32_131 : i32 to vector<2x128xi32>
    %395 = arith.cmpi eq, %11, %394 : vector<2x128xi32>
    %396 = arith.andi %393, %395 : vector<2x128xi1>
    %cst_132 = arith.constant 0.000000e+00 : f32
    %397 = vector.broadcast %382 : f32 to vector<2x128xf32>
    %398 = vector.broadcast %cst_132 : f32 to vector<2x128xf32>
    %399 = arith.select %396, %397, %398 : vector<2x128xi1>, vector<2x128xf32>
    %400 = arith.addf %391, %399 : vector<2x128xf32>
    %c0_133 = arith.constant 0 : index
    %c0_134 = arith.constant 0 : index
    %c0_135 = arith.constant 0 : index
    %401 = vector.load %arg4[%c0_133, %c0_134, %c0_135] : memref<1x2x128xf32, #tpu.memory_space<vmem>>, vector<1x2x128xf32>
    %402 = vector.shape_cast %401 : vector<1x2x128xf32> to vector<2x128xf32>
    %403 = vector.shape_cast %400 : vector<2x128xf32> to vector<1x2x128xf32>
    tpu.vector_store %arg4[%c0_133, %c0_134, %c0_135], %403 {strides = array<i32>} : memref<1x2x128xf32, #tpu.memory_space<vmem>>, vector<1x2x128xf32>,
    return
  }
  func.func @transform_0(%arg0: i32) -> (i32, i32, i32) {
    %c0_i32 = arith.constant 0 : i32
    %c0_i32_0 = arith.constant 0 : i32
    %c0_i32_1 = arith.constant 0 : i32
    return %arg0, %c0_i32, %c0_i32_0 : i32, i32, i32
  }
  func.func @transform_1(%arg0: i32) -> (i32, i32, i32) {
    %c0_i32 = arith.constant 0 : i32
    %c0_i32_0 = arith.constant 0 : i32
    %c0_i32_1 = arith.constant 0 : i32
    return %arg0, %c0_i32, %c0_i32_0 : i32, i32, i32
  }
  func.func @transform_2(%arg0: i32) -> (i32, i32, i32) {
    %c0_i32 = arith.constant 0 : i32
    %c0_i32_0 = arith.constant 0 : i32
    %c0_i32_1 = arith.constant 0 : i32
    return %arg0, %c0_i32, %c0_i32_0 : i32, i32, i32
  }
  func.func @transform_3(%arg0: i32) -> (i32, i32, i32) {
    %c0_i32 = arith.constant 0 : i32
    %c0_i32_0 = arith.constant 0 : i32
    %c0_i32_1 = arith.constant 0 : i32
    return %arg0, %c0_i32, %c0_i32_0 : i32, i32, i32
  }
}

</mosaic_0001>

<llo_original>
// kernel: tpu_custom_call.1
$region0: #{tpu_custom_call.1}
  #allocation0 [shape = 'u32[]', space=smem, size = 0x4, offset = 0x4, fixed_abs, tag = 'smem constant byte address 0x4 - core index']
  #allocation1 [shape = 'u32[144,128]{1,0:T(1,128)}', space=vmem, size = 0x12000, scoped, tag = 'internal scratch']
  %s0 = inlined_call_operand.hbm [shape: f32[2,16,128], index: 0, kind: input, shape index: {}]
  %s1 = inlined_call_operand.hbm [shape: f32[2,16,128], index: 1, kind: input, shape index: {}]
  %s2 = inlined_call_operand.hbm [shape: f32[2,16,128], index: 2, kind: input, shape index: {}]
  %s3 = inlined_call_operand.hbm [shape: f32[2,2,128], index: 3, kind: output, shape index: {}]
  %s4 = sld [smem:[#allocation0]]
  $region57: #{tpu_custom_call.1} parent=0
    _
  %s6 = ssub.s32 1, %s4
  %s7 = scalar_select 0, %s6, %s4
  $region1: #{tpu_custom_call.1} parent=0
    #allocation2 [shape = 'u8[16384]{0}', space=vmem, size = 0x4000, scoped, tag = 'input window, operand 0']
    #allocation3 [shape = 's32[2]{0}', space=sflag, size = 0x8, scoped, tag = 'scoped memory for tpu_custom_call.1']
    #allocation4 [shape = 's32[2]{0}', space=sflag, size = 0x8, scoped, tag = 'scoped memory for tpu_custom_call.1']
    #allocation5 [shape = 'u8[16384]{0}', space=vmem, size = 0x4000, scoped, tag = 'input window, operand 1']
    #allocation6 [shape = 's32[2]{0}', space=sflag, size = 0x8, scoped, tag = 'scoped memory for tpu_custom_call.1']
    #allocation7 [shape = 'u8[16384]{0}', space=vmem, size = 0x4000, scoped, tag = 'input window, operand 2']
    #allocation8 [shape = 'u8[2048]{0}', space=vmem, size = 0x800, scoped, tag = 'output window, operand 0']
    %8 = vsyncpa [#allocation3], 0
    %s9 = scalar_lea.sflag [#allocation3], 1
    %10 = vsyncpa %s9, 0
    %11 = vsyncpa [#allocation6], 0
    %s12 = scalar_lea.sflag [#allocation6], 1
    %13 = vsyncpa %s12, 0
    %14 = vsyncpa [#allocation4], 0
    %s15 = scalar_lea.sflag [#allocation4], 1
    %16 = vsyncpa %s15, 0
    loop: start=0, step=1, limit=4
    $region2: #{tpu_custom_call.1} parent=1 // loop_pre_header
      _
    $region3: #{tpu_custom_call.1} parent=1 // loop_header
      %s18 = sphi 0, %s22
      %p19 = scmp.ge.s32.totalorder %s18, 4
      %s28 = sphi 0, %s30
      %s31 = sphi 0, %s28
      %s32 = sphi 0, %s31
      %s48 = sphi 0, %s32
      %s54 = sphi 0, %s56
      %s57 = sphi 0, %s54
      %s58 = sphi 0, %s57
      %s74 = sphi 0, %s58
      %s80 = sphi 0, %s82
      %s83 = sphi 0, %s80
      %s84 = sphi 0, %s83
      %s100 = sphi 0, %s84
      %s106 = sphi 0, %s108
      %s109 = sphi 0, %s106
      %s110 = sphi 0, %s109
      %s126 = sphi 0, %s110
    $region4: #{tpu_custom_call.1} parent=1 // loop_header_branch
      %21 = sbr.rel (%p19) target = $region8
    $region5: #{tpu_custom_call.1} parent=1 // loop_body
      %s23 = ssub.s32 %s18, 1
      %s24 = ssub.s32 %s18, 2
      %s25 = sadd.s32 %s18, 1
      %s26 = ssub.s32 %s18, %s25
      %p27 = scmp.eq.s32.totalorder %s26, 0
      %s29 = sadd.s32 %s28, 1
      %s30 = scalar_select %p27, %s28, %s29
      %p33 = pneg %p27
      %p34 = scmp.eq.s32.totalorder %s18, 1
      %p35 = por %p33, %p34
      %p36 = scmp.ne.s32.totalorder %s28, %s31
      %p37 = scmp.eq.s32.totalorder %s18, 0
      %p38 = por %p36, %p37
      %p39 = scmp.ne.s32.totalorder %s28, %s31
      %p40 = scmp.eq.s32.totalorder %s23, 1
      %p41 = por %p39, %p40
      %p42 = scmp.ne.s32.totalorder %s31, %s32
      %p43 = scmp.eq.s32.totalorder %s23, 0
      %p44 = por %p42, %p43
      %p45 = scmp.ne.s32.totalorder %s31, %s32
      %p46 = scmp.eq.s32.totalorder %s24, 1
      %p47 = por %p45, %p46
      %p49 = scmp.ne.s32.totalorder %s32, %s48
      %p50 = scmp.eq.s32.totalorder %s24, 0
      %p51 = por %p49, %p50
      %s52 = ssub.s32 %s18, %s25
      %p53 = scmp.eq.s32.totalorder %s52, 0
      %s55 = sadd.s32 %s54, 1
      %s56 = scalar_select %p53, %s54, %s55
      %p59 = pneg %p53
      %p60 = scmp.eq.s32.totalorder %s18, 1
      %p61 = por %p59, %p60
      %p62 = scmp.ne.s32.totalorder %s54, %s57
      %p63 = scmp.eq.s32.totalorder %s18, 0
      %p64 = por %p62, %p63
      %p65 = scmp.ne.s32.totalorder %s54, %s57
      %p66 = scmp.eq.s32.totalorder %s23, 1
      %p67 = por %p65, %p66
      %p68 = scmp.ne.s32.totalorder %s57, %s58
      %p69 = scmp.eq.s32.totalorder %s23, 0
      %p70 = por %p68, %p69
      %p71 = scmp.ne.s32.totalorder %s57, %s58
      %p72 = scmp.eq.s32.totalorder %s24, 1
      %p73 = por %p71, %p72
      %p75 = scmp.ne.s32.totalorder %s58, %s74
      %p76 = scmp.eq.s32.totalorder %s24, 0
      %p77 = por %p75, %p76
      %s78 = ssub.s32 %s18, %s25
      %p79 = scmp.eq.s32.totalorder %s78, 0
      %s81 = sadd.s32 %s80, 1
      %s82 = scalar_select %p79, %s80, %s81
      %p85 = pneg %p79
      %p86 = scmp.eq.s32.totalorder %s18, 1
      %p87 = por %p85, %p86
      %p88 = scmp.ne.s32.totalorder %s80, %s83
      %p89 = scmp.eq.s32.totalorder %s18, 0
      %p90 = por %p88, %p89
      %p91 = scmp.ne.s32.totalorder %s80, %s83
      %p92 = scmp.eq.s32.totalorder %s23, 1
      %p93 = por %p91, %p92
      %p94 = scmp.ne.s32.totalorder %s83, %s84
      %p95 = scmp.eq.s32.totalorder %s23, 0
      %p96 = por %p94, %p95
      %p97 = scmp.ne.s32.totalorder %s83, %s84
      %p98 = scmp.eq.s32.totalorder %s24, 1
      %p99 = por %p97, %p98
      %p101 = scmp.ne.s32.totalorder %s84, %s100
      %p102 = scmp.eq.s32.totalorder %s24, 0
      %p103 = por %p101, %p102
      %s104 = ssub.s32 %s18, %s25
      %p105 = scmp.eq.s32.totalorder %s104, 0
      %s107 = sadd.s32 %s106, 1
      %s108 = scalar_select %p105, %s106, %s107
      %p111 = pneg %p105
      %p112 = scmp.eq.s32.totalorder %s18, 1
      %p113 = por %p111, %p112
      %p114 = scmp.ne.s32.totalorder %s106, %s109
      %p115 = scmp.eq.s32.totalorder %s18, 0
      %p116 = por %p114, %p115
      %p117 = scmp.ne.s32.totalorder %s106, %s109
      %p118 = scmp.eq.s32.totalorder %s23, 1
      %p119 = por %p117, %p118
      %p120 = scmp.ne.s32.totalorder %s109, %s110
      %p121 = scmp.eq.s32.totalorder %s23, 0
      %p122 = por %p120, %p121
      %p123 = scmp.ne.s32.totalorder %s109, %s110
      %p124 = scmp.eq.s32.totalorder %s24, 1
      %p125 = por %p123, %p124
      %p127 = scmp.ne.s32.totalorder %s110, %s126
      %p128 = scmp.eq.s32.totalorder %s24, 0
      %p129 = por %p127, %p128
      %p130 = scmp.le.s32.totalorder 1, %s18
      %p131 = scmp.lt.s32.totalorder %s18, 3
      %p132 = pnand %p130, %p131
      %p133 = pneg %p132
      // Predicated region
      $region9: #{tpu_custom_call.1} parent=5 // pred_check
        _
      $region10: #{tpu_custom_call.1} parent=5 // pred_check_branch
        %135 = sbr.rel (%p132) target = $region12
      $region11: #{tpu_custom_call.1} parent=5 // pred_region
        %s136 = ssub.s32 %s18, 1
      $region12: #{tpu_custom_call.1} parent=5 // pred_fallthru
        _
      %p137 = scmp.lt.s32.totalorder %s18, 2
      // Predicated region
      $region13: #{tpu_custom_call.1} parent=5 // pred_check
        %p138 = pneg %p137
      $region14: #{tpu_custom_call.1} parent=5 // pred_check_branch
        %140 = sbr.rel (%p138) target = $region16
      $region15: #{tpu_custom_call.1} parent=5 // pred_region
        // Predicated region
        $region17: #{tpu_custom_call.1} parent=15 // pred_check
          %p141 = pneg %p38
        $region18: #{tpu_custom_call.1} parent=15 // pred_check_branch
          %143 = sbr.rel (%p141) target = $region20
        $region19: #{tpu_custom_call.1} parent=15 // pred_region
          %s144 = sand.u32 %s28, 1
          %s145 = scalar_lea.sflag [#allocation3], %s144
          %s146 = sand.u32 %s28, 1
          %s147 = smul.addr %s146, 16
          %s148 = scalar_lea.vmem [#allocation2], %s147
          %s150 = ssub.s32 256, 256
          %151 = vsyncadd %s145, %s150
          %s152 = smul.addr %s18, 2
          %s153 = smul.addr %s152, 128
          %s154 = scalar_lea.hbm %s0, %s153
          %s155 = sshll.u32 %s148, 4
          %s156 = int_to_ptr.vmem [resolvable:$true] %s155
          %161 = dma.hbm_to_vmem [thread:$0]  %s154, 256, %s156, %s145, 128, 128, 8
        $region20: #{tpu_custom_call.1} parent=15 // pred_fallthru
          _
        // Predicated region
        $region21: #{tpu_custom_call.1} parent=15 // pred_check
          %p162 = pneg %p64
        $region22: #{tpu_custom_call.1} parent=15 // pred_check_branch
          %164 = sbr.rel (%p162) target = $region24
        $region23: #{tpu_custom_call.1} parent=15 // pred_region
          %s165 = sand.u32 %s18, 1
          %s166 = scalar_lea.sflag [#allocation6], %s165
          %s167 = sand.u32 %s54, 1
          %s168 = smul.addr %s167, 16
          %s169 = scalar_lea.vmem [#allocation5], %s168
          %s171 = ssub.s32 256, 256
          %172 = vsyncadd %s166, %s171
          %s173 = smul.addr %s18, 2
          %s174 = smul.addr %s173, 128
          %s175 = scalar_lea.hbm %s1, %s174
          %s176 = sshll.u32 %s169, 4
          %s177 = int_to_ptr.vmem [resolvable:$true] %s176
          %182 = dma.hbm_to_vmem [thread:$0]  %s175, 256, %s177, %s166, 128, 128, 8
        $region24: #{tpu_custom_call.1} parent=15 // pred_fallthru
          _
        // Predicated region
        $region25: #{tpu_custom_call.1} parent=15 // pred_check
          %p183 = pneg %p90
        $region26: #{tpu_custom_call.1} parent=15 // pred_check_branch
          %185 = sbr.rel (%p183) target = $region28
        $region27: #{tpu_custom_call.1} parent=15 // pred_region
          %s186 = sand.u32 %s18, 1
          %s187 = scalar_lea.sflag [#allocation6], %s186
          %s188 = sand.u32 %s80, 1
          %s189 = smul.addr %s188, 16
          %s190 = scalar_lea.vmem [#allocation7], %s189
          %s192 = ssub.s32 256, 256
          %193 = vsyncadd %s187, %s192
          %s194 = smul.addr %s18, 2
          %s195 = smul.addr %s194, 128
          %s196 = scalar_lea.hbm %s2, %s195
          %s197 = sshll.u32 %s190, 4
          %s198 = int_to_ptr.vmem [resolvable:$true] %s197
          %203 = dma.hbm_to_vmem [thread:$0]  %s196, 256, %s198, %s187, 128, 128, 8
        $region28: #{tpu_custom_call.1} parent=15 // pred_fallthru
          _
      $region16: #{tpu_custom_call.1} parent=5 // pred_fallthru
        _
      %p204 = scmp.le.s32.totalorder 1, %s18
      %p205 = scmp.lt.s32.totalorder %s18, 3
      %p206 = pnand %p204, %p205
      %p207 = pneg %p206
      // Predicated region
      $region29: #{tpu_custom_call.1} parent=5 // pred_check
        _
      $region30: #{tpu_custom_call.1} parent=5 // pred_check_branch
        %209 = sbr.rel (%p206) target = $region32
      $region31: #{tpu_custom_call.1} parent=5 // pred_region
        %s210 = ssub.s32 %s18, 1
        %s211 = sand.u32 %s31, 1
        %s212 = scalar_lea.sflag [#allocation3], %s211
        %s213 = sand.u32 %s31, 1
        %s214 = smul.addr %s213, 16
        %s215 = scalar_lea.vmem [#allocation2], %s214
        // Predicated region
        $region33: #{tpu_custom_call.1} parent=31 // pred_check
          %p216 = pneg %p44
        $region34: #{tpu_custom_call.1} parent=31 // pred_check_branch
          %218 = sbr.rel (%p216) target = $region36
        $region35: #{tpu_custom_call.1} parent=31 // pred_region
          %219 = dma.done %s212, 256
        $region36: #{tpu_custom_call.1} parent=31 // pred_fallthru
          _
        %s220 = sand.u32 %s23, 1
        %s221 = scalar_lea.sflag [#allocation6], %s220
        %s222 = sand.u32 %s57, 1
        %s223 = smul.addr %s222, 16
        %s224 = scalar_lea.vmem [#allocation5], %s223
        // Predicated region
        $region37: #{tpu_custom_call.1} parent=31 // pred_check
          %p225 = pneg %p70
        $region38: #{tpu_custom_call.1} parent=31 // pred_check_branch
          %227 = sbr.rel (%p225) target = $region40
        $region39: #{tpu_custom_call.1} parent=31 // pred_region
          %228 = dma.done %s221, 256
        $region40: #{tpu_custom_call.1} parent=31 // pred_fallthru
          _
        %s229 = sand.u32 %s23, 1
        %s230 = scalar_lea.sflag [#allocation6], %s229
        %s231 = sand.u32 %s83, 1
        %s232 = smul.addr %s231, 16
        %s233 = scalar_lea.vmem [#allocation7], %s232
        // Predicated region
        $region41: #{tpu_custom_call.1} parent=31 // pred_check
          %p234 = pneg %p96
        $region42: #{tpu_custom_call.1} parent=31 // pred_check_branch
          %236 = sbr.rel (%p234) target = $region44
        $region43: #{tpu_custom_call.1} parent=31 // pred_region
          %237 = dma.done %s230, 256
        $region44: #{tpu_custom_call.1} parent=31 // pred_fallthru
          _
        %s238 = sand.u32 %s31, 1
        %s239 = scalar_lea.sflag [#allocation3], %s238
        %s240 = sand.u32 %s31, 1
        %s241 = smul.addr %s240, 16
        %s242 = scalar_lea.vmem [#allocation2], %s241
        %p243 = pneg %p44
        %p244 = pneg %p41
        %s245 = sand.u32 %s23, 1
        %s246 = scalar_lea.sflag [#allocation6], %s245
        %s247 = sand.u32 %s57, 1
        %s248 = smul.addr %s247, 16
        %s249 = scalar_lea.vmem [#allocation5], %s248
        %p250 = pneg %p70
        %p251 = pneg %p67
        %s252 = sand.u32 %s23, 1
        %s253 = scalar_lea.sflag [#allocation6], %s252
        %s254 = sand.u32 %s83, 1
        %s255 = smul.addr %s254, 16
        %s256 = scalar_lea.vmem [#allocation7], %s255
        %p257 = pneg %p96
        %p258 = pneg %p93
        %p259 = pneg %p122
        %p260 = pneg %p119
        %s261 = sand.u32 %s109, 1
        %s262 = scalar_lea.sflag [#allocation4], %s261
        %s263 = sand.u32 %s109, 1
        %s264 = smul.addr %s263, 2
        %s265 = scalar_lea.vmem [#allocation8], %s264
        %v266 = vld [vmem:[%s215] sm:$0xff]
        %v267 = vld [vmem:[%s215 + $0x8] sm:$0xff]
        %v268 = vld [vmem:[%s224] sm:$0xff]
        %v269 = vld [vmem:[%s224 + $0x8] sm:$0xff]
        %v270 = vld [vmem:[%s233] sm:$0xff]
        %v271 = vld [vmem:[%s233 + $0x8] sm:$0xff]
        %v272 = vsub.f32 %v266, %v268
        %v273 = vsub.f32 %v267, %v269
        %v274 = vmul.f32 %v270, %v272
        %v275 = vmul.f32 %v271, %v273
        %v276 = vlaneseq
        %v277 = vshrl.u32 %v276, 7
        %v278 = vadd.s32 %v277, 8
        %v279 = vlaneseq
        %v280 = vand.u32 %v279, 127
        %281 = vrot.lane.b32.xlu0 %v274, 127
        %v282 = vpop.permute.xlu0 %281
        %283 = vrot.lane.b32.xlu0 %v275, 127
        %v284 = vpop.permute.xlu0 %283
        %285 = vrot.lane.b32.xlu0 %v270, 127
        %v286 = vpop.permute.xlu0 %285
        %287 = vrot.lane.b32.xlu0 %v271, 127
        %v288 = vpop.permute.xlu0 %287
        %v289 = vadd.s32 %v280, 1
        %vm290 = vcmp.lt.s32.totalorder %v289, 128
        %v291 = vsub.f32 %v282, %v274
        %v292 = vsub.f32 %v284, %v275
        %v293 = vand.u32 2147483647, %v291
        %v294 = vand.u32 2147483647, %v292
        %v295 = vmul.f32 %v286, %v270
        %v296 = vmul.f32 %v288, %v271
        %v297 = vmul.f32 %v293, %v295
        %v298 = vmul.f32 %v294, %v296
        %v299 = vsel %vm290, %v297, 0.0
        %v300 = vsel %vm290, %v298, 0.0
        %v301 = vadd.f32 %v299, %v300
        %302 = vadd.xlane.f32.xlu0 %v301
        %v303 = vpop.xlane.xlu0 %302
        %v304 = vrot.slane %v303, 4
        %v305 = vadd.f32 %v303, %v304
        %v306 = vrot.slane %v305, 2
        %v307 = vadd.f32 %v305, %v306
        %v308 = vrot.slane %v307, 1
        %v309 = vadd.f32 %v307, %v308
        %s310 = vtos %v309
        %s311 = sadd.f32 %s310, 0.0
        %v312 = vrot.slane %v274, 1
        %v313 = vrot.slane %v275, 1
        %vm314 = vcmp.lt.s32.totalorder %v277, 7
        %v315 = vsel %vm314, %v312, %v313
        %v316 = vsel %vm314, %v313, %v312
        %v317 = vrot.slane %v270, 1
        %v318 = vrot.slane %v271, 1
        %v319 = vsel %vm314, %v317, %v318
        %v320 = vsel %vm314, %v318, %v317
        %v321 = vadd.s32 %v277, 1
        %v322 = vadd.s32 %v278, 1
        %vm323 = vcmp.lt.s32.totalorder %v321, 16
        %vm324 = vcmp.lt.s32.totalorder %v322, 16
        %v325 = vsub.f32 %v315, %v274
        %v326 = vsub.f32 %v316, %v275
        %v327 = vand.u32 2147483647, %v325
        %v328 = vand.u32 2147483647, %v326
        %v329 = vmul.f32 %v319, %v270
        %v330 = vmul.f32 %v320, %v271
        %v331 = vmul.f32 %v327, %v329
        %v332 = vmul.f32 %v328, %v330
        %v333 = vsel %vm323, %v331, 0.0
        %v334 = vsel %vm324, %v332, 0.0
        %v335 = vadd.f32 %v333, %v334
        %336 = vadd.xlane.f32.xlu0 %v335
        %v337 = vpop.xlane.xlu0 %336
        %v338 = vrot.slane %v337, 4
        %v339 = vadd.f32 %v337, %v338
        %v340 = vrot.slane %v339, 2
        %v341 = vadd.f32 %v339, %v340
        %v342 = vrot.slane %v341, 1
        %v343 = vadd.f32 %v341, %v342
        %s344 = vtos %v343
        %s345 = sadd.f32 %s311, %s344
        %v346 = vadd.f32 %v270, %v271
        %347 = vadd.xlane.f32.xlu0 %v346
        %v348 = vpop.xlane.xlu0 %347
        %v349 = vrot.slane %v348, 4
        %v350 = vadd.f32 %v348, %v349
        %v351 = vrot.slane %v350, 2
        %v352 = vadd.f32 %v350, %v351
        %v353 = vrot.slane %v352, 1
        %v354 = vadd.f32 %v352, %v353
        %s355 = vtos %v354
        %vm356 = vcmp.eq.s32.totalorder %v277, 0
        %vm357 = vcmp.eq.s32.totalorder %v280, 0
        %vm358 = vmand %vm356, %vm357
        %v359 = vstv %s345
        %v360 = vsel %vm358, %v359, 0.0
        %v361 = vadd.f32 %v360, 0.0
        %vm362 = vcmp.eq.s32.totalorder %v277, 1
        %vm363 = vmand %vm362, %vm357
        %v364 = vstv %s355
        %v365 = vsel %vm363, %v364, 0.0
        %v366 = vadd.f32 %v361, %v365
        %vm367 = vcmp.lt.s32.totalorder %v277, 0
        %v368 = vsub.s32 0, %v277
        %v369 = vsel %vm367, %v368, %v277
        %v370 = vshrl.u32 %v369, 1
        %v371 = vand.u32 %v369, 1
        %v372 = vsub.s32 0, %v371
        %v373 = vsel %vm367, %v372, %v371
        %vm374 = vcmp.lt.s32.totalorder %v278, 0
        %v375 = vsub.s32 0, %v278
        %v376 = vsel %vm374, %v375, %v278
        %v377 = vshrl.u32 %v376, 1
        %v378 = vand.u32 %v376, 1
        %v379 = vsub.s32 0, %v378
        %v380 = vsel %vm374, %v379, %v378
        %vm381 = vcmp.ne.s32.totalorder %v373, 0
        %vm382 = vcmp.ne.s32.totalorder %v380, 0
        %vm383 = vcmp.lt.s32.totalorder %v373, 0
        %vm384 = vcmp.lt.s32.totalorder %v380, 0
        %vm385 = vmand %vm383, %vm381
        %vm386 = vmand %vm384, %vm382
        %v387 = vadd.s32 %v373, 2
        %v388 = vadd.s32 %v380, 2
        %v389 = vsel %vm385, %v387, %v373
        %v390 = vsel %vm386, %v388, %v380
        %vm391 = vcmp.eq.s32.totalorder %v389, 0
        %vm392 = vcmp.eq.s32.totalorder %v390, 0
        %vm393 = vcmp.lt.s32.totalorder %v280, 0
        %v394 = vsub.s32 0, %v280
        %v395 = vsel %vm393, %v394, %v280
        %v396 = vshrl.u32 %v395, 1
        %v397 = vand.u32 %v395, 1
        %v398 = vsub.s32 0, %v397
        %v399 = vsel %vm393, %v398, %v397
        %vm400 = vcmp.ne.s32.totalorder %v399, 0
        %vm401 = vcmp.lt.s32.totalorder %v399, 0
        %vm402 = vmand %vm401, %vm400
        %v403 = vadd.s32 %v399, 2
        %v404 = vsel %vm402, %v403, %v399
        %vm405 = vcmp.eq.s32.totalorder %v404, 0
        %vm406 = vmand %vm391, %vm405
        %vm407 = vmand %vm392, %vm405
        %408 = vrot.lane.b32.xlu0 %v274, 126
        %v409 = vpop.permute.xlu0 %408
        %410 = vrot.lane.b32.xlu0 %v275, 126
        %v411 = vpop.permute.xlu0 %410
        %412 = vrot.lane.b32.xlu0 %v270, 126
        %v413 = vpop.permute.xlu0 %412
        %414 = vrot.lane.b32.xlu0 %v271, 126
        %v415 = vpop.permute.xlu0 %414
        %v416 = vadd.s32 %v280, 2
        %vm417 = vcmp.lt.s32.totalorder %v416, 128
        %vm418 = vmand %vm406, %vm417
        %vm419 = vmand %vm407, %vm417
        %v420 = vsub.f32 %v409, %v274
        %v421 = vsub.f32 %v411, %v275
        %v422 = vand.u32 2147483647, %v420
        %v423 = vand.u32 2147483647, %v421
        %v424 = vmul.f32 %v413, %v270
        %v425 = vmul.f32 %v415, %v271
        %v426 = vmul.f32 %v422, %v424
        %v427 = vmul.f32 %v423, %v425
        %v428 = vsel %vm418, %v426, 0.0
        %v429 = vsel %vm419, %v427, 0.0
        %v430 = vadd.f32 %v428, %v429
        %431 = vadd.xlane.f32.xlu0 %v430
        %v432 = vpop.xlane.xlu0 %431
        %v433 = vrot.slane %v432, 4
        %v434 = vadd.f32 %v432, %v433
        %v435 = vrot.slane %v434, 2
        %v436 = vadd.f32 %v434, %v435
        %v437 = vrot.slane %v436, 1
        %v438 = vadd.f32 %v436, %v437
        %s439 = vtos %v438
        %s440 = sadd.f32 %s439, 0.0
        %v441 = vrot.slane %v274, 2
        %v442 = vrot.slane %v275, 2
        %vm443 = vcmp.lt.s32.totalorder %v277, 6
        %v444 = vsel %vm443, %v441, %v442
        %v445 = vsel %vm443, %v442, %v441
        %v446 = vrot.slane %v270, 2
        %v447 = vrot.slane %v271, 2
        %v448 = vsel %vm443, %v446, %v447
        %v449 = vsel %vm443, %v447, %v446
        %v450 = vadd.s32 %v277, 2
        %v451 = vadd.s32 %v278, 2
        %vm452 = vcmp.lt.s32.totalorder %v450, 16
        %vm453 = vcmp.lt.s32.totalorder %v451, 16
        %vm454 = vmand %vm406, %vm452
        %vm455 = vmand %vm407, %vm453
        %v456 = vsub.f32 %v444, %v274
        %v457 = vsub.f32 %v445, %v275
        %v458 = vand.u32 2147483647, %v456
        %v459 = vand.u32 2147483647, %v457
        %v460 = vmul.f32 %v448, %v270
        %v461 = vmul.f32 %v449, %v271
        %v462 = vmul.f32 %v458, %v460
        %v463 = vmul.f32 %v459, %v461
        %v464 = vsel %vm454, %v462, 0.0
        %v465 = vsel %vm455, %v463, 0.0
        %v466 = vadd.f32 %v464, %v465
        %467 = vadd.xlane.f32.xlu0 %v466
        %v468 = vpop.xlane.xlu0 %467
        %v469 = vrot.slane %v468, 4
        %v470 = vadd.f32 %v468, %v469
        %v471 = vrot.slane %v470, 2
        %v472 = vadd.f32 %v470, %v471
        %v473 = vrot.slane %v472, 1
        %v474 = vadd.f32 %v472, %v473
        %s475 = vtos %v474
        %s476 = sadd.f32 %s440, %s475
        %v477 = vsel %vm406, %v270, 0.0
        %v478 = vsel %vm407, %v271, 0.0
        %v479 = vadd.f32 %v477, %v478
        %480 = vadd.xlane.f32.xlu0 %v479
        %v481 = vpop.xlane.xlu0 %480
        %v482 = vrot.slane %v481, 4
        %v483 = vadd.f32 %v481, %v482
        %v484 = vrot.slane %v483, 2
        %v485 = vadd.f32 %v483, %v484
        %v486 = vrot.slane %v485, 1
        %v487 = vadd.f32 %v485, %v486
        %s488 = vtos %v487
        %vm489 = vcmp.eq.s32.totalorder %v280, 1
        %vm490 = vmand %vm356, %vm489
        %v491 = vstv %s476
        %v492 = vsel %vm490, %v491, 0.0
        %v493 = vadd.f32 %v366, %v492
        %vm494 = vmand %vm362, %vm489
        %v495 = vstv %s488
        %v496 = vsel %vm494, %v495, 0.0
        %v497 = vadd.f32 %v493, %v496
        %vm498 = vcmp.lt.s32.totalorder %v277, 0
        %v499 = vsub.s32 0, %v277
        %v500 = vsel %vm498, %v499, %v277
        %v501 = vshrl.u32 %v500, 2
        %v502 = vand.u32 %v500, 3
        %v503 = vsub.s32 0, %v502
        %v504 = vsel %vm498, %v503, %v502
        %vm505 = vcmp.lt.s32.totalorder %v278, 0
        %v506 = vsub.s32 0, %v278
        %v507 = vsel %vm505, %v506, %v278
        %v508 = vshrl.u32 %v507, 2
        %v509 = vand.u32 %v507, 3
        %v510 = vsub.s32 0, %v509
        %v511 = vsel %vm505, %v510, %v509
        %vm512 = vcmp.ne.s32.totalorder %v504, 0
        %vm513 = vcmp.ne.s32.totalorder %v511, 0
        %vm514 = vcmp.lt.s32.totalorder %v504, 0
        %vm515 = vcmp.lt.s32.totalorder %v511, 0
        %vm516 = vmand %vm514, %vm512
        %vm517 = vmand %vm515, %vm513
        %v518 = vadd.s32 %v504, 4
        %v519 = vadd.s32 %v511, 4
        %v520 = vsel %vm516, %v518, %v504
        %v521 = vsel %vm517, %v519, %v511
        %vm522 = vcmp.eq.s32.totalorder %v520, 0
        %vm523 = vcmp.eq.s32.totalorder %v521, 0
        %vm524 = vcmp.lt.s32.totalorder %v280, 0
        %v525 = vsub.s32 0, %v280
        %v526 = vsel %vm524, %v525, %v280
        %v527 = vshrl.u32 %v526, 2
        %v528 = vand.u32 %v526, 3
        %v529 = vsub.s32 0, %v528
        %v530 = vsel %vm524, %v529, %v528
        %vm531 = vcmp.ne.s32.totalorder %v530, 0
        %vm532 = vcmp.lt.s32.totalorder %v530, 0
        %vm533 = vmand %vm532, %vm531
        %v534 = vadd.s32 %v530, 4
        %v535 = vsel %vm533, %v534, %v530
        %vm536 = vcmp.eq.s32.totalorder %v535, 0
        %vm537 = vmand %vm522, %vm536
        %vm538 = vmand %vm523, %vm536
        %539 = vrot.lane.b32.xlu0 %v274, 124
        %v540 = vpop.permute.xlu0 %539
        %541 = vrot.lane.b32.xlu0 %v275, 124
        %v542 = vpop.permute.xlu0 %541
        %543 = vrot.lane.b32.xlu0 %v270, 124
        %v544 = vpop.permute.xlu0 %543
        %545 = vrot.lane.b32.xlu0 %v271, 124
        %v546 = vpop.permute.xlu0 %545
        %v547 = vadd.s32 %v280, 4
        %vm548 = vcmp.lt.s32.totalorder %v547, 128
        %vm549 = vmand %vm537, %vm548
        %vm550 = vmand %vm538, %vm548
        %v551 = vsub.f32 %v540, %v274
        %v552 = vsub.f32 %v542, %v275
        %v553 = vand.u32 2147483647, %v551
        %v554 = vand.u32 2147483647, %v552
        %v555 = vmul.f32 %v544, %v270
        %v556 = vmul.f32 %v546, %v271
        %v557 = vmul.f32 %v553, %v555
        %v558 = vmul.f32 %v554, %v556
        %v559 = vsel %vm549, %v557, 0.0
        %v560 = vsel %vm550, %v558, 0.0
        %v561 = vadd.f32 %v559, %v560
        %562 = vadd.xlane.f32.xlu0 %v561
        %v563 = vpop.xlane.xlu0 %562
        %v564 = vrot.slane %v563, 4
        %v565 = vadd.f32 %v563, %v564
        %v566 = vrot.slane %v565, 2
        %v567 = vadd.f32 %v565, %v566
        %v568 = vrot.slane %v567, 1
        %v569 = vadd.f32 %v567, %v568
        %s570 = vtos %v569
        %s571 = sadd.f32 %s570, 0.0
        %v572 = vrot.slane %v274, 4
        %v573 = vrot.slane %v275, 4
        %vm574 = vcmp.lt.s32.totalorder %v277, 4
        %v575 = vsel %vm574, %v572, %v573
        %v576 = vsel %vm574, %v573, %v572
        %v577 = vrot.slane %v270, 4
        %v578 = vrot.slane %v271, 4
        %v579 = vsel %vm574, %v577, %v578
        %v580 = vsel %vm574, %v578, %v577
        %v581 = vadd.s32 %v277, 4
        %v582 = vadd.s32 %v278, 4
        %vm583 = vcmp.lt.s32.totalorder %v581, 16
        %vm584 = vcmp.lt.s32.totalorder %v582, 16
        %vm585 = vmand %vm537, %vm583
        %vm586 = vmand %vm538, %vm584
        %v587 = vsub.f32 %v575, %v274
        %v588 = vsub.f32 %v576, %v275
        %v589 = vand.u32 2147483647, %v587
        %v590 = vand.u32 2147483647, %v588
        %v591 = vmul.f32 %v579, %v270
        %v592 = vmul.f32 %v580, %v271
        %v593 = vmul.f32 %v589, %v591
        %v594 = vmul.f32 %v590, %v592
        %v595 = vsel %vm585, %v593, 0.0
        %v596 = vsel %vm586, %v594, 0.0
        %v597 = vadd.f32 %v595, %v596
        %598 = vadd.xlane.f32.xlu0 %v597
        %v599 = vpop.xlane.xlu0 %598
        %v600 = vrot.slane %v599, 4
        %v601 = vadd.f32 %v599, %v600
        %v602 = vrot.slane %v601, 2
        %v603 = vadd.f32 %v601, %v602
        %v604 = vrot.slane %v603, 1
        %v605 = vadd.f32 %v603, %v604
        %s606 = vtos %v605
        %s607 = sadd.f32 %s571, %s606
        %v608 = vsel %vm537, %v270, 0.0
        %v609 = vsel %vm538, %v271, 0.0
        %v610 = vadd.f32 %v608, %v609
        %611 = vadd.xlane.f32.xlu0 %v610
        %v612 = vpop.xlane.xlu0 %611
        %v613 = vrot.slane %v612, 4
        %v614 = vadd.f32 %v612, %v613
        %v615 = vrot.slane %v614, 2
        %v616 = vadd.f32 %v614, %v615
        %v617 = vrot.slane %v616, 1
        %v618 = vadd.f32 %v616, %v617
        %s619 = vtos %v618
        %vm620 = vcmp.eq.s32.totalorder %v280, 2
        %vm621 = vmand %vm356, %vm620
        %v622 = vstv %s607
        %v623 = vsel %vm621, %v622, 0.0
        %v624 = vadd.f32 %v497, %v623
        %vm625 = vmand %vm362, %vm620
        %v626 = vstv %s619
        %v627 = vsel %vm625, %v626, 0.0
        %v628 = vadd.f32 %v624, %v627
        %vm629 = vcmp.lt.s32.totalorder %v277, 0
        %v630 = vsub.s32 0, %v277
        %v631 = vsel %vm629, %v630, %v277
        %v632 = vshrl.u32 %v631, 3
        %v633 = vand.u32 %v631, 7
        %v634 = vsub.s32 0, %v633
        %v635 = vsel %vm629, %v634, %v633
        %vm636 = vcmp.lt.s32.totalorder %v278, 0
        %v637 = vsub.s32 0, %v278
        %v638 = vsel %vm636, %v637, %v278
        %v639 = vshrl.u32 %v638, 3
        %v640 = vand.u32 %v638, 7
        %v641 = vsub.s32 0, %v640
        %v642 = vsel %vm636, %v641, %v640
        %vm643 = vcmp.ne.s32.totalorder %v635, 0
        %vm644 = vcmp.ne.s32.totalorder %v642, 0
        %vm645 = vcmp.lt.s32.totalorder %v635, 0
        %vm646 = vcmp.lt.s32.totalorder %v642, 0
        %vm647 = vmand %vm645, %vm643
        %vm648 = vmand %vm646, %vm644
        %v649 = vadd.s32 %v635, 8
        %v650 = vadd.s32 %v642, 8
        %v651 = vsel %vm647, %v649, %v635
        %v652 = vsel %vm648, %v650, %v642
        %vm653 = vcmp.eq.s32.totalorder %v651, 0
        %vm654 = vcmp.eq.s32.totalorder %v652, 0
        %vm655 = vcmp.lt.s32.totalorder %v280, 0
        %v656 = vsub.s32 0, %v280
        %v657 = vsel %vm655, %v656, %v280
        %v658 = vshrl.u32 %v657, 3
        %v659 = vand.u32 %v657, 7
        %v660 = vsub.s32 0, %v659
        %v661 = vsel %vm655, %v660, %v659
        %vm662 = vcmp.ne.s32.totalorder %v661, 0
        %vm663 = vcmp.lt.s32.totalorder %v661, 0
        %vm664 = vmand %vm663, %vm662
        %v665 = vadd.s32 %v661, 8
        %v666 = vsel %vm664, %v665, %v661
        %vm667 = vcmp.eq.s32.totalorder %v666, 0
        %vm668 = vmand %vm653, %vm667
        %vm669 = vmand %vm654, %vm667
        %670 = vrot.lane.b32.xlu0 %v274, 120
        %v671 = vpop.permute.xlu0 %670
        %672 = vrot.lane.b32.xlu0 %v275, 120
        %v673 = vpop.permute.xlu0 %672
        %674 = vrot.lane.b32.xlu0 %v270, 120
        %v675 = vpop.permute.xlu0 %674
        %676 = vrot.lane.b32.xlu0 %v271, 120
        %v677 = vpop.permute.xlu0 %676
        %v678 = vadd.s32 %v280, 8
        %vm679 = vcmp.lt.s32.totalorder %v678, 128
        %vm680 = vmand %vm668, %vm679
        %vm681 = vmand %vm669, %vm679
        %v682 = vsub.f32 %v671, %v274
        %v683 = vsub.f32 %v673, %v275
        %v684 = vand.u32 2147483647, %v682
        %v685 = vand.u32 2147483647, %v683
        %v686 = vmul.f32 %v675, %v270
        %v687 = vmul.f32 %v677, %v271
        %v688 = vmul.f32 %v684, %v686
        %v689 = vmul.f32 %v685, %v687
        %v690 = vsel %vm680, %v688, 0.0
        %v691 = vsel %vm681, %v689, 0.0
        %v692 = vadd.f32 %v690, %v691
        %693 = vadd.xlane.f32.xlu0 %v692
        %v694 = vpop.xlane.xlu0 %693
        %v695 = vrot.slane %v694, 4
        %v696 = vadd.f32 %v694, %v695
        %v697 = vrot.slane %v696, 2
        %v698 = vadd.f32 %v696, %v697
        %v699 = vrot.slane %v698, 1
        %v700 = vadd.f32 %v698, %v699
        %s701 = vtos %v700
        %s702 = sadd.f32 %s701, 0.0
        %v703 = vadd.s32 %v278, 8
        %vm704 = vcmp.lt.s32.totalorder %v278, 16
        %vm705 = vcmp.lt.s32.totalorder %v703, 16
        %vm706 = vmand %vm668, %vm704
        %vm707 = vmand %vm669, %vm705
        %v708 = vsub.f32 %v275, %v274
        %v709 = vsub.f32 %v274, %v275
        %v710 = vand.u32 2147483647, %v708
        %v711 = vand.u32 2147483647, %v709
        %v712 = vmul.f32 %v271, %v270
        %v713 = vmul.f32 %v710, %v712
        %v714 = vmul.f32 %v711, %v712
        %v715 = vsel %vm706, %v713, 0.0
        %v716 = vsel %vm707, %v714, 0.0
        %v717 = vadd.f32 %v715, %v716
        %718 = vadd.xlane.f32.xlu0 %v717
        %v719 = vpop.xlane.xlu0 %718
        %v720 = vrot.slane %v719, 4
        %v721 = vadd.f32 %v719, %v720
        %v722 = vrot.slane %v721, 2
        %v723 = vadd.f32 %v721, %v722
        %v724 = vrot.slane %v723, 1
        %v725 = vadd.f32 %v723, %v724
        %s726 = vtos %v725
        %s727 = sadd.f32 %s702, %s726
        %v728 = vsel %vm668, %v270, 0.0
        %v729 = vsel %vm669, %v271, 0.0
        %v730 = vadd.f32 %v728, %v729
        %731 = vadd.xlane.f32.xlu0 %v730
        %v732 = vpop.xlane.xlu0 %731
        %v733 = vrot.slane %v732, 4
        %v734 = vadd.f32 %v732, %v733
        %v735 = vrot.slane %v734, 2
        %v736 = vadd.f32 %v734, %v735
        %v737 = vrot.slane %v736, 1
        %v738 = vadd.f32 %v736, %v737
        %s739 = vtos %v738
        %vm740 = vcmp.eq.s32.totalorder %v280, 3
        %vm741 = vmand %vm356, %vm740
        %v742 = vstv %s727
        %v743 = vsel %vm741, %v742, 0.0
        %v744 = vadd.f32 %v628, %v743
        %vm745 = vmand %vm362, %vm740
        %v746 = vstv %s739
        %v747 = vsel %vm745, %v746, 0.0
        %v748 = vadd.f32 %v744, %v747
        %749 = vst [vmem:[%s265] sm:$0x3] %v748
        %s750 = sand.u32 %s109, 1
        %s751 = scalar_lea.sflag [#allocation4], %s750
        %s752 = sand.u32 %s109, 1
        %s753 = smul.addr %s752, 2
        %s754 = scalar_lea.vmem [#allocation8], %s753
        // Predicated region
        $region45: #{tpu_custom_call.1} parent=31 // pred_check
          %p755 = pneg %p119
        $region46: #{tpu_custom_call.1} parent=31 // pred_check_branch
          %757 = sbr.rel (%p755) target = $region48
        $region47: #{tpu_custom_call.1} parent=31 // pred_region
          %s759 = ssub.s32 32, 32
          %760 = vsyncadd %s751, %s759
          %s761 = smul.addr %s23, 32
          %s762 = scalar_lea.hbm %s3, %s761
          %s764 = sshll.u32 %s754, 4
          %s765 = int_to_ptr.vmem [resolvable:$true] %s764
          %767 = dma.vmem_to_hbm [thread:$0]  %s765, 32, %s762, %s751
        $region48: #{tpu_custom_call.1} parent=31 // pred_fallthru
          _
      $region32: #{tpu_custom_call.1} parent=5 // pred_fallthru
        _
      %p768 = scmp.le.s32.totalorder 2, %s18
      // Predicated region
      $region49: #{tpu_custom_call.1} parent=5 // pred_check
        %p769 = pneg %p768
      $region50: #{tpu_custom_call.1} parent=5 // pred_check_branch
        %771 = sbr.rel (%p769) target = $region52
      $region51: #{tpu_custom_call.1} parent=5 // pred_region
        %s772 = ssub.s32 %s18, 2
        // Predicated region
        $region53: #{tpu_custom_call.1} parent=51 // pred_check
          %p773 = pneg %p125
        $region54: #{tpu_custom_call.1} parent=51 // pred_check_branch
          %775 = sbr.rel (%p773) target = $region56
        $region55: #{tpu_custom_call.1} parent=51 // pred_region
          %s776 = sand.u32 %s110, 1
          %s777 = scalar_lea.sflag [#allocation4], %s776
          %s778 = sand.u32 %s110, 1
          %s779 = smul.addr %s778, 2
          %s780 = scalar_lea.vmem [#allocation8], %s779
          %781 = dma.done %s777, 32
        $region56: #{tpu_custom_call.1} parent=51 // pred_fallthru
          _
      $region52: #{tpu_custom_call.1} parent=5 // pred_fallthru
        _
    $region6: #{tpu_custom_call.1} parent=1 // loop_footer
      %s22 = sadd.s32 1, %s18
    $region7: #{tpu_custom_call.1} parent=1 // loop_footer_branch
      %17 = sbr.rel target = $region3
    $region8: #{tpu_custom_call.1} parent=1 // loop_exit
      _
    %782 = vsyncpa [#allocation3], 1
    %s783 = scalar_lea.sflag [#allocation3], 1
    %784 = vsyncpa %s783, 1
    %785 = vsyncpa [#allocation6], 1
    %s786 = scalar_lea.sflag [#allocation6], 1
    %787 = vsyncpa %s786, 1
    %788 = vsyncpa [#allocation4], 1
    %s789 = scalar_lea.sflag [#allocation4], 1
    %790 = vsyncpa %s789, 1

</llo_original>
